<compile_context>
chip_gen: v7x
topology: tpu7x:2x2x1
jax: 0.10.0
libtpu: 0.0.40
codegen_flags: <defaults>
</compile_context>

<pallas_src>
import functools

import jax
import jax.numpy as jnp
from jax import lax
from jax.experimental import pallas as pl
from jax.experimental.pallas import tpu as pltpu


def _ips_bce_kernel(x_ref, y_ref, pi_ref, pu_ref, loss_ref, acc_ref, *,
                    clip, alpha, inv_n, rows_total, needs_row_mask):
    i = pl.program_id(0)            # reduction axis over row-tiles
    tr = x_ref.shape[0]             # static tile rows (power of two, >= 8)

    @pl.when(i == 0)
    def _():
        acc_ref[...] = jnp.zeros_like(acc_ref)

    x = x_ref[...].astype(jnp.float32)
    y = y_ref[...].astype(jnp.float32)
    pi = jnp.clip(pi_ref[...].astype(jnp.float32), clip, 1.0)
    pu = jnp.clip(pu_ref[...].astype(jnp.float32), clip, 1.0)

    # Negated, fused IPS weight:
    #   -(alpha/pi + (1-alpha)/pu) == ((-alpha)*pu + (alpha-1)*pi) * 1/(pi*pu)
    neg_w = ((-alpha) * pu + (alpha - 1.0) * pi) * pl.reciprocal(pi * pu, approx=False)

    # BCE with PyTorch's log clamp at -100 (clamp BEFORE the multiply so that the
    # zero-contribution padding x=0, y=0 gives exactly 0, never 0*inf):
    #   y*log(x) + (1-y)*log(1-x) == log(1-x) + y*(log(x) - log(1-x))
    log_x = jnp.maximum(jnp.log(x), -100.0)
    log_1mx = jnp.maximum(jnp.log(1.0 - x), -100.0)
    per_elem = neg_w * (log_1mx + y * (log_x - log_1mx))

    if needs_row_mask:
        # Last row-tile may overrun the slab: garbage rows (possibly NaN) are dropped by
        # a select, which does not propagate NaN from the unselected branch.
        row = i * tr + lax.broadcasted_iota(jnp.int32, per_elem.shape, 0)
        per_elem = jnp.where(row < rows_total, per_elem, 0.0)

    # Fold (tr, 128) -> (8, 128): log2-depth tree of sublane-aligned VPU adds (no XLU,
    # no scalar dependency chain between grid steps).
    t = per_elem
    while t.shape[0] > 8:
        h = t.shape[0] // 2
        t = t[:h, :] + t[h:, :]
    acc_ref[...] += t

    @pl.when(i == pl.num_programs(0) - 1)
    def _():
        loss_ref[0, 0] = jnp.sum(acc_ref[...]) * inv_n


def ips_dual_bce_loss(outputs, labels, pi_score, pu_score, *, clip, alpha=0.5,
                      max_tile_rows=2048, lanes=128):
    """outputs, labels: (N,) float; pi_score, pu_score: (N, 1) float (any float dtype)."""
    n = outputs.shape[0]

    # Glue (free reshapes only): flatten / squeeze(-1).
    x = outputs.reshape(-1)
    y = labels.reshape(-1)
    pi = pi_score.reshape(-1)
    pu = pu_score.reshape(-1)

    # Lane-dense slab (rows, 128).  rows >= 8 so every block spans full (8, 128) tiles.
    rows = max(8, -(-n // lanes))
    slab = rows * lanes
    if slab != n:
        # Only for ragged / tiny N. Padding values x=0, y=0, pi=pu=1 contribute exactly 0.
        pad = slab - n
        x = jnp.pad(x, (0, pad))
        y = jnp.pad(y, (0, pad))
        pi = jnp.pad(pi, (0, pad), constant_values=1.0)
        pu = jnp.pad(pu, (0, pad), constant_values=1.0)

    x2, y2, pi2, pu2 = (a.reshape(rows, lanes) for a in (x, y, pi, pu))  # free reshape

    # Tile rows: largest power of two <= rows, capped at max_tile_rows
    # (2048 x 128 x f32 = 1 MiB per input tile; 4 inputs x 2 buffers = 8 MiB resident).
    tr = min(max_tile_rows, 1 << (rows.bit_length() - 1))
    num_tiles = pl.cdiv(rows, tr)
    needs_row_mask = (rows % tr) != 0

    kernel = functools.partial(
        _ips_bce_kernel, clip=float(clip), alpha=float(alpha), inv_n=1.0 / float(n),
        rows_total=rows, needs_row_mask=needs_row_mask)

    in_spec = pl.BlockSpec((tr, lanes), lambda i: (i, 0))
    out = pl.pallas_call(
        kernel,
        out_shape=jax.ShapeDtypeStruct((1, 1), jnp.float32),
        grid_spec=pltpu.PrefetchScalarGridSpec(
            num_scalar_prefetch=0,
            grid=(num_tiles,),
            in_specs=[in_spec, in_spec, in_spec, in_spec],
            out_specs=pl.BlockSpec((1, 1), lambda i: (0, 0),
                                   memory_space=pltpu.MemorySpace.SMEM),
            scratch_shapes=[pltpu.VMEM((8, lanes), jnp.float32)],
        ),
        compiler_params=pltpu.CompilerParams(
            dimension_semantics=("arbitrary",),
            vmem_limit_bytes=48 * 1024 * 1024),
    )(x2, y2, pi2, pu2)
    return out[0, 0]


if __name__ == "__main__":
    # Module hyperparameters (deterministic, set in-script).
    min_clip = 0.1
    max_clip = 0.3
    total_steps = 100
    warmup_rate = 0.1
    alpha = 0.5
    # __init__ sets self.clip = max_clip, and forward uses self.clip.
    clip = max_clip

    # Small deterministic inputs; N deliberately NOT a multiple of 8/128 to exercise padding.
    N = 250
    key = jax.random.PRNGKey(0)
    k1, k2, k3, k4 = jax.random.split(key, 4)
    outputs = jax.nn.sigmoid(jax.random.normal(k1, (N,), dtype=jnp.float32))
    labels = jax.random.bernoulli(k2, 0.5, (N,)).astype(jnp.float32)
    pi_score = jax.random.uniform(k3, (N, 1), dtype=jnp.float32, minval=0.01, maxval=1.0)
    pu_score = jax.random.uniform(k4, (N, 1), dtype=jnp.float32, minval=0.01, maxval=1.0)

    loss = ips_dual_bce_loss(outputs, labels, pi_score, pu_score, clip=clip, alpha=alpha)
    jax.block_until_ready(loss)

    # Pure-JAX reference check (same math as the PyTorch module, outside Pallas).
    pi_c = jnp.clip(pi_score, clip, 1.0)
    pu_c = jnp.clip(pu_score, clip, 1.0)
    w = (alpha / pi_c + (1.0 - alpha) / pu_c).squeeze(-1)
    ref = jnp.mean(
        -w * (labels * jnp.maximum(jnp.log(outputs), -100.0)
              + (1.0 - labels) * jnp.maximum(jnp.log(1.0 - outputs), -100.0))
    )
    assert jnp.allclose(loss, ref, rtol=1e-5, atol=1e-5), (loss, ref)

    print("KERNEL_OK")
</pallas_src>

<mosaic_0001>
module attributes {stable_mosaic.version = 11 : i64} {
  func.func @_ips_bce_kernel(%arg0: i32, %arg1: memref<8x128xf32, #tpu.memory_space<vmem>>, %arg2: memref<8x128xf32, #tpu.memory_space<vmem>>, %arg3: memref<8x128xf32, #tpu.memory_space<vmem>>, %arg4: memref<8x128xf32, #tpu.memory_space<vmem>>, %arg5: memref<1x1xf32, #tpu.memory_space<smem>>, %arg6: memref<8x128xf32, #tpu.memory_space<vmem>>) attributes {dimension_semantics = [#tpu.dimension_semantics<arbitrary>], iteration_bounds = array<i64: 1>, scalar_prefetch = 0 : i64, scratch_operands = 1 : i64, tpu.core_type = #tpu.core_type<tc>, window_params = [{transform_indices = @transform_0, window_bounds = array<i64: 8, 128>}, {transform_indices = @transform_1, window_bounds = array<i64: 8, 128>}, {transform_indices = @transform_2, window_bounds = array<i64: 8, 128>}, {transform_indices = @transform_3, window_bounds = array<i64: 8, 128>}, {transform_indices = @transform_4, window_bounds = array<i64: 1, 1>}]} {
    %c0_i32 = arith.constant 0 : i32
    %0 = arith.cmpi eq, %arg0, %c0_i32 : i32
    %1 = arith.extui %0 : i1 to i32
    %c0_i32_0 = arith.constant 0 : i32
    %2 = arith.cmpi ne, %1, %c0_i32_0 : i32
    scf.if %2 {
      %cst_22 = arith.constant 0.000000e+00 : f32
      %41 = vector.broadcast %cst_22 : f32 to vector<8x128xf32>
      %c0_23 = arith.constant 0 : index
      %c0_24 = arith.constant 0 : index
      %42 = vector.load %arg6[%c0_23, %c0_24] : memref<8x128xf32, #tpu.memory_space<vmem>>, vector<8x128xf32>
      tpu.vector_store %arg6[%c0_23, %c0_24], %41 {strides = array<i32>} : memref<8x128xf32, #tpu.memory_space<vmem>>, vector<8x128xf32>,
    } else {
    }
    %c0 = arith.constant 0 : index
    %c0_1 = arith.constant 0 : index
    %3 = vector.load %arg1[%c0, %c0_1] : memref<8x128xf32, #tpu.memory_space<vmem>>, vector<8x128xf32>
    %c0_2 = arith.constant 0 : index
    %c0_3 = arith.constant 0 : index
    %4 = vector.load %arg2[%c0_2, %c0_3] : memref<8x128xf32, #tpu.memory_space<vmem>>, vector<8x128xf32>
    %c0_4 = arith.constant 0 : index
    %c0_5 = arith.constant 0 : index
    %5 = vector.load %arg3[%c0_4, %c0_5] : memref<8x128xf32, #tpu.memory_space<vmem>>, vector<8x128xf32>
    %cst = arith.constant 3.000000e-01 : f32
    %cst_6 = arith.constant 1.000000e+00 : f32
    %6 = vector.broadcast %cst : f32 to vector<8x128xf32>
    %7 = arith.maximumf %6, %5 : vector<8x128xf32>
    %8 = vector.broadcast %cst_6 : f32 to vector<8x128xf32>
    %9 = arith.minimumf %8, %7 : vector<8x128xf32>
    %c0_7 = arith.constant 0 : index
    %c0_8 = arith.constant 0 : index
    %10 = vector.load %arg4[%c0_7, %c0_8] : memref<8x128xf32, #tpu.memory_space<vmem>>, vector<8x128xf32>
    %cst_9 = arith.constant 3.000000e-01 : f32
    %cst_10 = arith.constant 1.000000e+00 : f32
    %11 = vector.broadcast %cst_9 : f32 to vector<8x128xf32>
    %12 = arith.maximumf %11, %10 : vector<8x128xf32>
    %13 = vector.broadcast %cst_10 : f32 to vector<8x128xf32>
    %14 = arith.minimumf %13, %12 : vector<8x128xf32>
    %cst_11 = arith.constant -5.000000e-01 : f32
    %15 = vector.broadcast %cst_11 : f32 to vector<8x128xf32>
    %16 = arith.mulf %15, %14 : vector<8x128xf32>
    %cst_12 = arith.constant -5.000000e-01 : f32
    %17 = vector.broadcast %cst_12 : f32 to vector<8x128xf32>
    %18 = arith.mulf %17, %9 : vector<8x128xf32>
    %19 = arith.addf %16, %18 : vector<8x128xf32>
    %20 = arith.mulf %9, %14 : vector<8x128xf32>
    %21 = tpu.reciprocal %20 : vector<8x128xf32> -> vector<8x128xf32>
    %22 = arith.mulf %19, %21 : vector<8x128xf32>
    %23 = math.log %3 : vector<8x128xf32>
    %cst_13 = arith.constant -1.000000e+02 : f32
    %24 = vector.broadcast %cst_13 : f32 to vector<8x128xf32>
    %25 = arith.maximumf %23, %24 : vector<8x128xf32>
    %cst_14 = arith.constant 1.000000e+00 : f32
    %26 = vector.broadcast %cst_14 : f32 to vector<8x128xf32>
    %27 = arith.subf %26, %3 : vector<8x128xf32>
    %28 = math.log %27 : vector<8x128xf32>
    %cst_15 = arith.constant -1.000000e+02 : f32
    %29 = vector.broadcast %cst_15 : f32 to vector<8x128xf32>
    %30 = arith.maximumf %28, %29 : vector<8x128xf32>
    %31 = arith.subf %25, %30 : vector<8x128xf32>
    %32 = arith.mulf %4, %31 : vector<8x128xf32>
    %33 = arith.addf %30, %32 : vector<8x128xf32>
    %34 = arith.mulf %22, %33 : vector<8x128xf32>
    %c0_16 = arith.constant 0 : index
    %c0_17 = arith.constant 0 : index
    %35 = vector.load %arg6[%c0_16, %c0_17] : memref<8x128xf32, #tpu.memory_space<vmem>>, vector<8x128xf32>
    %36 = arith.addf %35, %34 : vector<8x128xf32>
    %c0_18 = arith.constant 0 : index
    %c0_19 = arith.constant 0 : index
    %37 = vector.load %arg6[%c0_18, %c0_19] : memref<8x128xf32, #tpu.memory_space<vmem>>, vector<8x128xf32>
    tpu.vector_store %arg6[%c0_18, %c0_19], %36 {strides = array<i32>} : memref<8x128xf32, #tpu.memory_space<vmem>>, vector<8x128xf32>,
    %c0_i32_20 = arith.constant 0 : i32
    %38 = arith.cmpi eq, %arg0, %c0_i32_20 : i32
    %39 = arith.extui %38 : i1 to i32
    %c0_i32_21 = arith.constant 0 : i32
    %40 = arith.cmpi ne, %39, %c0_i32_21 : i32
    scf.if %40 {
      %c0_22 = arith.constant 0 : index
      %c0_23 = arith.constant 0 : index
      %41 = vector.load %arg6[%c0_22, %c0_23] : memref<8x128xf32, #tpu.memory_space<vmem>>, vector<8x128xf32>
      %42 = vector.shape_cast %41 : vector<8x128xf32> to vector<1x8x128xf32>
      %cst_24 = arith.constant dense<0.000000e+00> : vector<1xf32>
      %43 = vector.multi_reduction <add>, %42, %cst_24 [1, 2] : vector<1x8x128xf32> to vector<1xf32>
      %44 = vector.shape_cast %43 : vector<1xf32> to vector<1x1x1xf32>
      %45 = vector.extract %44[0, 0, 0] : f32 from vector<1x1x1xf32>
      %cst_25 = arith.constant 4.000000e-03 : f32
      %46 = arith.mulf %45, %cst_25 : f32
      %c0_26 = arith.constant 0 : index
      %c0_27 = arith.constant 0 : index
      %47 = memref.load %arg5[%c0_26, %c0_27] : memref<1x1xf32, #tpu.memory_space<smem>>
      memref.store %46, %arg5[%c0_26, %c0_27] : memref<1x1xf32, #tpu.memory_space<smem>>
    } else {
    }
    return
  }
  func.func @transform_0(%arg0: i32) -> (i32, i32) {
    %c0_i32 = arith.constant 0 : i32
    %c0_i32_0 = arith.constant 0 : i32
    return %arg0, %c0_i32 : i32, i32
  }
  func.func @transform_1(%arg0: i32) -> (i32, i32) {
    %c0_i32 = arith.constant 0 : i32
    %c0_i32_0 = arith.constant 0 : i32
    return %arg0, %c0_i32 : i32, i32
  }
  func.func @transform_2(%arg0: i32) -> (i32, i32) {
    %c0_i32 = arith.constant 0 : i32
    %c0_i32_0 = arith.constant 0 : i32
    return %arg0, %c0_i32 : i32, i32
  }
  func.func @transform_3(%arg0: i32) -> (i32, i32) {
    %c0_i32 = arith.constant 0 : i32
    %c0_i32_0 = arith.constant 0 : i32
    return %arg0, %c0_i32 : i32, i32
  }
  func.func @transform_4(%arg0: i32) -> (i32, i32) {
    %c0_i32 = arith.constant 0 : i32
    %c0_i32_0 = arith.constant 0 : i32
    %c0_i32_1 = arith.constant 0 : i32
    return %c0_i32, %c0_i32_0 : i32, i32
  }
}

</mosaic_0001>

<llo_original>
// kernel: tpu_custom_call.1
$region0: #{tpu_custom_call.1}
  #allocation0 [shape = 'u32[]', space=smem, size = 0x4, offset = 0x4, fixed_abs, tag = 'smem constant byte address 0x4 - core index']
  #allocation1 [shape = 'u32[144,128]{1,0:T(1,128)}', space=vmem, size = 0x12000, scoped, tag = 'internal scratch']
  #allocation2 [shape = 'f32[8,128]{1,0:T(8,128)}', space=vmem, size = 0x1000, scoped, tag = 'scratch operand']
  %s0 = inlined_call_operand.hbm [shape: f32[8,128], index: 0, kind: input, shape index: {}]
  %s1 = inlined_call_operand.hbm [shape: f32[8,128], index: 1, kind: input, shape index: {}]
  %s2 = inlined_call_operand.hbm [shape: f32[8,128], index: 2, kind: input, shape index: {}]
  %s3 = inlined_call_operand.vmem [shape: f32[8,128], index: 3, kind: input, shape index: {}]
  %s4 = inlined_call_operand.hbm [shape: f32[1,1], index: 4, kind: output, shape index: {}]
  %s5 = sld [smem:[#allocation0]]
  $region46: #{tpu_custom_call.1} parent=0
    _
  %s7 = ssub.s32 1, %s5
  %s8 = scalar_select 0, %s7, %s5
  $region1: #{tpu_custom_call.1} parent=0
    #allocation3 [shape = 'u8[4096]{0}', space=vmem, size = 0x1000, scoped, tag = 'input window, operand 0, single buffered']
    #allocation4 [shape = 's32[1]{0}', space=sflag, size = 0x4, scoped, tag = 'scoped memory for tpu_custom_call.1']
    #allocation5 [shape = 's32[1]{0}', space=sflag, size = 0x4, scoped, tag = 'scoped memory for tpu_custom_call.1']
    #allocation6 [shape = 'u8[4096]{0}', space=vmem, size = 0x1000, scoped, tag = 'input window, operand 1, single buffered']
    #allocation7 [shape = 's32[1]{0}', space=sflag, size = 0x4, scoped, tag = 'scoped memory for tpu_custom_call.1']
    #allocation8 [shape = 'u8[4096]{0}', space=vmem, size = 0x1000, scoped, tag = 'input window, operand 2, single buffered']
    #allocation9 [shape = 'u8[512]{0}', space=smem, size = 0x200, scoped, tag = 'output window, operand 0, single buffered']
    %9 = vsyncpa [#allocation4], 0
    %10 = vsyncpa [#allocation7], 0
    %11 = vsyncpa [#allocation5], 0
    // Predicated region
    $region2: #{tpu_custom_call.1} parent=1 // pred_check
      _
    $region3: #{tpu_custom_call.1} parent=1 // pred_check_branch
      %13 = sbr.rel (0) target = $region5
    $region4: #{tpu_custom_call.1} parent=1 // pred_region
      %s15 = ssub.s32 128, 128
      %16 = vsyncadd [#allocation4], %s15
      %s18 = sshll.u32 [#allocation3], 4
      %s19 = int_to_ptr.vmem [resolvable:$true] %s18
      %21 = dma.hbm_to_vmem [thread:$0]  %s0, 128, %s19, [#allocation4]
    $region5: #{tpu_custom_call.1} parent=1 // pred_fallthru
      _
    // Predicated region
    $region6: #{tpu_custom_call.1} parent=1 // pred_check
      _
    $region7: #{tpu_custom_call.1} parent=1 // pred_check_branch
      %23 = sbr.rel (0) target = $region9
    $region8: #{tpu_custom_call.1} parent=1 // pred_region
      %s25 = ssub.s32 128, 128
      %26 = vsyncadd [#allocation7], %s25
      %s28 = sshll.u32 [#allocation6], 4
      %s29 = int_to_ptr.vmem [resolvable:$true] %s28
      %31 = dma.hbm_to_vmem [thread:$0]  %s1, 128, %s29, [#allocation7]
    $region9: #{tpu_custom_call.1} parent=1 // pred_fallthru
      _
    // Predicated region
    $region10: #{tpu_custom_call.1} parent=1 // pred_check
      _
    $region11: #{tpu_custom_call.1} parent=1 // pred_check_branch
      %33 = sbr.rel (0) target = $region13
    $region12: #{tpu_custom_call.1} parent=1 // pred_region
      %s35 = ssub.s32 128, 128
      %36 = vsyncadd [#allocation7], %s35
      %s38 = sshll.u32 [#allocation8], 4
      %s39 = int_to_ptr.vmem [resolvable:$true] %s38
      %41 = dma.hbm_to_vmem [thread:$0]  %s2, 128, %s39, [#allocation7]
    $region13: #{tpu_custom_call.1} parent=1 // pred_fallthru
      _
    // Predicated region
    $region14: #{tpu_custom_call.1} parent=1 // pred_check
      _
    $region15: #{tpu_custom_call.1} parent=1 // pred_check_branch
      %43 = sbr.rel (0) target = $region17
    $region16: #{tpu_custom_call.1} parent=1 // pred_region
      _
    $region17: #{tpu_custom_call.1} parent=1 // pred_fallthru
      _
    // Predicated region
    $region18: #{tpu_custom_call.1} parent=1 // pred_check
      _
    $region19: #{tpu_custom_call.1} parent=1 // pred_check_branch
      %45 = sbr.rel (0) target = $region21
    $region20: #{tpu_custom_call.1} parent=1 // pred_region
      %46 = dma.done [#allocation4], 128
    $region21: #{tpu_custom_call.1} parent=1 // pred_fallthru
      _
    // Predicated region
    $region22: #{tpu_custom_call.1} parent=1 // pred_check
      _
    $region23: #{tpu_custom_call.1} parent=1 // pred_check_branch
      %48 = sbr.rel (0) target = $region25
    $region24: #{tpu_custom_call.1} parent=1 // pred_region
      %49 = dma.done [#allocation7], 128
    $region25: #{tpu_custom_call.1} parent=1 // pred_fallthru
      _
    // Predicated region
    $region26: #{tpu_custom_call.1} parent=1 // pred_check
      _
    $region27: #{tpu_custom_call.1} parent=1 // pred_check_branch
      %51 = sbr.rel (0) target = $region29
    $region28: #{tpu_custom_call.1} parent=1 // pred_region
      %52 = dma.done [#allocation7], 128
    $region29: #{tpu_custom_call.1} parent=1 // pred_fallthru
      _
    %p53 = scmp.eq.s32.totalorder 0, 0
    // Predicated region
    $region30: #{tpu_custom_call.1} parent=1 // pred_check
      %p54 = pneg %p53
    $region31: #{tpu_custom_call.1} parent=1 // pred_check_branch
      %56 = sbr.rel (%p54) target = $region33
    $region32: #{tpu_custom_call.1} parent=1 // pred_region
      %57 = vst [vmem:[#allocation2] sm:$0xff] 0.0
    $region33: #{tpu_custom_call.1} parent=1 // pred_fallthru
      _
    %v58 = vld [vmem:[#allocation3] sm:$0xff]
    %v59 = vld [vmem:[#allocation6] sm:$0xff]
    %v60 = vld [vmem:[#allocation8] sm:$0xff]
    %v61 = vmax.f32 %v60, 0.3
    %v62 = vmin.f32 %v61, 1.0
    %v63 = vld [vmem:[%s3] sm:$0xff]
    %v64 = vmax.f32 %v63, 0.3
    %v65 = vmin.f32 %v64, 1.0
    %v66 = vmul.f32 %v65, -0.5
    %v67 = vmul.f32 %v62, -0.5
    %v68 = vadd.f32 %v66, %v67
    %v69 = vmul.f32 %v62, %v65
    %v70 = vrcp.pop %v69
    %v71 = vmul.f32 %v68, %v70
    %v72 = vlog2.pop %v58
    %v73 = vmul.f32 %v72, 0.6931472
    %v74 = vmax.f32 %v73, -100.0
    %v75 = vsub.f32 1.0, %v58
    %v76 = vlog2.pop %v75
    %v77 = vmul.f32 %v76, 0.6931472
    %v78 = vmax.f32 %v77, -100.0
    %v79 = vsub.f32 %v74, %v78
    %v80 = vmul.f32 %v59, %v79
    %v81 = vadd.f32 %v78, %v80
    %v82 = vmul.f32 %v71, %v81
    %v83 = vld [vmem:[#allocation2] sm:$0xff]
    %v84 = vadd.f32 %v83, %v82
    %85 = vst [vmem:[#allocation2] sm:$0xff] %v84
    // Predicated region
    $region34: #{tpu_custom_call.1} parent=1 // pred_check
      %p86 = pneg %p53
    $region35: #{tpu_custom_call.1} parent=1 // pred_check_branch
      %88 = sbr.rel (%p86) target = $region37
    $region36: #{tpu_custom_call.1} parent=1 // pred_region
      %v89 = vld [vmem:[#allocation2] sm:$0xff]
      %90 = vadd.xlane.f32.xlu0 %v89
      %v91 = vpop.xlane.xlu0 %90
      %v92 = vrot.slane %v91, 4
      %v93 = vadd.f32 %v91, %v92
      %v94 = vrot.slane %v93, 2
      %v95 = vadd.f32 %v93, %v94
      %v96 = vrot.slane %v95, 1
      %v97 = vadd.f32 %v95, %v96
      %s98 = vtos %v97
      %s99 = smul.f32 %s98, 0.004
      %s100 = scalar_lea.smem [#allocation9], 0
      %101 = sst [smem:[%s100]] %s99
    $region37: #{tpu_custom_call.1} parent=1 // pred_fallthru
      _
    // Predicated region
    $region38: #{tpu_custom_call.1} parent=1 // pred_check
      _
    $region39: #{tpu_custom_call.1} parent=1 // pred_check_branch
      %103 = sbr.rel (0) target = $region41
    $region40: #{tpu_custom_call.1} parent=1 // pred_region
      %s105 = ssub.s32 16, 16
      %106 = vsyncadd [#allocation5], %s105
      %109 = dma.smem_to_hbm [#allocation9], 16, %s4, [#allocation5]
    $region41: #{tpu_custom_call.1} parent=1 // pred_fallthru
      _
    // Predicated region
    $region42: #{tpu_custom_call.1} parent=1 // pred_check
      _
    $region43: #{tpu_custom_call.1} parent=1 // pred_check_branch
      %111 = sbr.rel (0) target = $region45
    $region44: #{tpu_custom_call.1} parent=1 // pred_region
      %112 = dma.done [#allocation5], 16
    $region45: #{tpu_custom_call.1} parent=1 // pred_fallthru
      _
    %113 = sfence
    %114 = vsyncpa [#allocation4], 1
    %115 = vsyncpa [#allocation7], 1
    %116 = vsyncpa [#allocation5], 1

</llo_original>
